<compile_context>
chip_gen: v6e
topology: v6e:2x2x1
jax: 0.10.0
libtpu: 0.0.40
codegen_flags: <defaults>
</compile_context>

<pallas_src>
import functools
import math

import jax
import jax.numpy as jnp
from jax.experimental import pallas as pl
from jax.experimental.pallas import tpu as pltpu

NEG_INF = -1e30


def _round_up(x, m):
    return ((x + m - 1) // m) * m


_BF16_ENERGY_CACHE = None


def _use_bf16_energy():
    """bf16 tanh/energy only where EUP/VPU have a bf16 path (v6e / v7x)."""
    global _BF16_ENERGY_CACHE
    if _BF16_ENERGY_CACHE is None:
        try:
            kind = jax.devices()[0].device_kind.lower()
            _BF16_ENERGY_CACHE = ('v6' in kind) or ('v7' in kind) or ('tpu7' in kind)
        except Exception:
            _BF16_ENERGY_CACHE = False
    return _BF16_ENERGY_CACHE


# ---------------------------------------------------------------------------
# Kernel 1 (per sequence): attention keys = enc @ Wa_e + ba   (bf16 output)
# Grid over batch rows -> parallelizable across v7x's two TensorCores.
# ---------------------------------------------------------------------------
def _keys_kernel(enc_ref, wa_e_ref, ba_ref, keys_ref):
    k = jnp.dot(enc_ref[0], wa_e_ref[...], preferred_element_type=jnp.float32)
    keys_ref[0] = (k + ba_ref[...]).astype(keys_ref.dtype)


# ---------------------------------------------------------------------------
# Kernel 2 (per token, fused): attention + 2-layer LSTM (at V-tile 0) + vocab
# projection streamed over V tiles with an online logsumexp in scratch.
# ---------------------------------------------------------------------------
def _decode_step_kernel(emb_ref, enc_ref, keys_ref, tmask_ref, h_ref, c_ref,
                        wa_h_ref, v_ref, w0_ref, b0_ref, w1_ref, b1_ref,
                        wo_ref, bo_ref,
                        hnew_ref, cnew_ref, attn_ref, logits_ref, lse_ref,
                        pin_sc, m_sc, s_sc, *, bf16_energy):
    j = pl.program_id(0)
    n_vt = pl.num_programs(0)
    bf16 = jnp.bfloat16
    Hp = wa_h_ref.shape[0]

    # ---- V-tile 0: attention + both LSTM layers (weights stay resident) ----
    @pl.when(j == 0)
    def _decode_core():
        h0 = h_ref[0]
        h1 = h_ref[1]
        c0 = c_ref[0]
        c1 = c_ref[1]

        # attention: energy = tanh(h1 @ Wa_h + keys); score = energy . v
        hid = jnp.dot(h1.astype(bf16), wa_h_ref[...],
                      preferred_element_type=jnp.float32)            # (B, Hp)
        if bf16_energy:
            energy = jnp.tanh(hid.astype(bf16)[:, None, :] + keys_ref[...])
        else:
            energy = jnp.tanh(hid[:, None, :] +
                              keys_ref[...].astype(jnp.float32))
        # lane reduce over H; T stays on the sublane axis (no relayout, no MXU)
        score = jnp.sum(energy * v_ref[...][None, :, :],
                        axis=2, keepdims=True)                       # (B, T, 1)
        score = score + tmask_ref[...]                               # mask pad T

        m = jnp.max(score, axis=1, keepdims=True)
        ex = jnp.exp(score - m)
        attn = ex / jnp.sum(ex, axis=1, keepdims=True)               # (B, T, 1)
        attn_ref[...] = attn

        # context: VPU broadcast-multiply + sublane reduce over T
        # (an M=1 MXU matmul would waste 127/255 of the array + relayouts)
        context = jnp.sum(attn * enc_ref[...], axis=1)               # (B, Hp) f32

        # LSTM layer 0: single fused gate GEMM over [emb | context | h0]
        # TODO(synk): nn.Dropout is identity in eval mode; training-mode
        # dropout (embedding / inter-layer) is not modeled here.
        x0 = jnp.concatenate([emb_ref[...], context, h0], axis=1)
        g0 = jnp.dot(x0.astype(bf16), w0_ref[...],
                     preferred_element_type=jnp.float32) + b0_ref[...]
        i0 = jax.nn.sigmoid(g0[:, 0 * Hp:1 * Hp])
        f0 = jax.nn.sigmoid(g0[:, 1 * Hp:2 * Hp])
        n0 = jnp.tanh(g0[:, 2 * Hp:3 * Hp])
        o0 = jax.nn.sigmoid(g0[:, 3 * Hp:4 * Hp])
        c0n = f0 * c0 + i0 * n0
        h0n = o0 * jnp.tanh(c0n)

        # LSTM layer 1: single fused gate GEMM over [h0n | h1]
        x1 = jnp.concatenate([h0n, h1], axis=1)
        g1 = jnp.dot(x1.astype(bf16), w1_ref[...],
                     preferred_element_type=jnp.float32) + b1_ref[...]
        i1 = jax.nn.sigmoid(g1[:, 0 * Hp:1 * Hp])
        f1 = jax.nn.sigmoid(g1[:, 1 * Hp:2 * Hp])
        n1 = jnp.tanh(g1[:, 2 * Hp:3 * Hp])
        o1 = jax.nn.sigmoid(g1[:, 3 * Hp:4 * Hp])
        c1n = f1 * c1 + i1 * n1
        h1n = o1 * jnp.tanh(c1n)

        hnew_ref[0] = h0n
        hnew_ref[1] = h1n
        cnew_ref[0] = c0n
        cnew_ref[1] = c1n
        # projection input [output | context], reused by every V tile
        pin_sc[...] = jnp.concatenate([h1n, context], axis=1).astype(bf16)
        m_sc[...] = jnp.full(m_sc.shape, NEG_INF, jnp.float32)
        s_sc[...] = jnp.zeros(s_sc.shape, jnp.float32)

    # ---- every V tile: projection GEMM + online logsumexp update ----
    logits = jnp.dot(pin_sc[...], wo_ref[...],
                     preferred_element_type=jnp.float32) + bo_ref[...]
    logits_ref[...] = logits                                         # lane-dense tile

    m_old = m_sc[...]
    m_new = jnp.maximum(m_old, jnp.max(logits, axis=1, keepdims=True))
    s_sc[...] = (s_sc[...] * jnp.exp(m_old - m_new)
                 + jnp.sum(jnp.exp(logits - m_new), axis=1, keepdims=True))
    m_sc[...] = m_new

    # ---- last V tile: emit logsumexp (caller does logp = logits - lse) ----
    @pl.when(j == n_vt - 1)
    def _finalize():
        lse_ref[...] = m_sc[...] + jnp.log(s_sc[...])


# ---------------------------------------------------------------------------
# Parameters
# ---------------------------------------------------------------------------
def init_params(key, embed_size, hidden_size, output_size):
    """Deterministic synthetic parameters at logical sizes (weights (in, out))."""
    H, E, V = hidden_size, embed_size, output_size
    ks = jax.random.split(key, 16)

    def u(k, shape, s):
        return jax.random.uniform(k, shape, jnp.float32, -s, s)

    sH = 1.0 / math.sqrt(H)
    sO = 1.0 / math.sqrt(2 * H)
    return dict(
        embed=u(ks[0], (V, E), 1.0),
        wa_h=u(ks[1], (H, H), sH), wa_e=u(ks[2], (H, H), sH), ba=u(ks[3], (1, H), sH),
        v=u(ks[4], (1, H), sH),
        wih0_e=u(ks[5], (E, 4 * H), sH), wih0_c=u(ks[6], (H, 4 * H), sH),
        whh0=u(ks[7], (H, 4 * H), sH), b0=u(ks[8], (1, 4 * H), sH),
        wih1=u(ks[9], (H, 4 * H), sH), whh1=u(ks[10], (H, 4 * H), sH),
        b1=u(ks[11], (1, 4 * H), sH),
        wo_h=u(ks[12], (H, V), sO), wo_c=u(ks[13], (H, V), sO), bo=u(ks[14], (1, V), sO),
    )


def pack_params(params, tile_v=None):
    """One-time packing: pad to lane/sublane aligned shapes, fuse the per-GEMM
    weight splits and cast weight matrices to bf16."""
    E = params['wih0_e'].shape[0]
    H = params['wa_h'].shape[0]
    V = params['wo_h'].shape[1]
    Hp = _round_up(H, 128)
    Ep = _round_up(E, 128)
    if tile_v is None:
        # TODO(synk): sweep tile_v 2048-4096 on v5e/v6e; keep <=2048 on v7x
        # (64 MiB physical VMEM) so 2 double-buffered wo tiles + logits fit.
        tile_v = min(_round_up(V, 128), 2048)
    Vp = _round_up(V, tile_v)
    bf16 = jnp.bfloat16

    def pad2(x, rows, cols):
        return jnp.pad(x, ((0, rows - x.shape[0]), (0, cols - x.shape[1])))

    def pad_gate_cols(w):
        # (in, 4H) -> (in, 4*Hp): pad each gate block separately so in-kernel
        # gate slices stay 128-lane aligned.
        n = w.shape[0]
        w4 = w.reshape(n, 4, H)
        w4 = jnp.pad(w4, ((0, 0), (0, 0), (0, Hp - H)))
        return w4.reshape(n, 4 * Hp)

    w0 = jnp.concatenate([
        pad2(pad_gate_cols(params['wih0_e']), Ep, 4 * Hp),
        pad2(pad_gate_cols(params['wih0_c']), Hp, 4 * Hp),
        pad2(pad_gate_cols(params['whh0']), Hp, 4 * Hp),
    ], axis=0)                                                    # (Ep+2Hp, 4Hp)
    w1 = jnp.concatenate([
        pad2(pad_gate_cols(params['wih1']), Hp, 4 * Hp),
        pad2(pad_gate_cols(params['whh1']), Hp, 4 * Hp),
    ], axis=0)                                                    # (2Hp, 4Hp)
    wo = jnp.concatenate([
        pad2(params['wo_h'], Hp, Vp),
        pad2(params['wo_c'], Hp, Vp),
    ], axis=0)                                                    # (2Hp, Vp)
    # padded vocab columns get a -inf bias so they vanish from the logsumexp
    bo = jnp.full((1, Vp), NEG_INF, jnp.float32).at[:, :V].set(params['bo'])

    return dict(
        embed=jnp.pad(params['embed'], ((0, 0), (0, Ep - E))),    # (V, Ep) f32
        wa_h=pad2(params['wa_h'], Hp, Hp).astype(bf16),
        wa_e=pad2(params['wa_e'], Hp, Hp).astype(bf16),
        ba=pad2(params['ba'], 1, Hp),
        v=pad2(params['v'], 1, Hp),                               # f32 (tiny)
        w0=w0.astype(bf16), b0=pad_gate_cols(params['b0']),
        w1=w1.astype(bf16), b1=pad_gate_cols(params['b1']),
        wo=wo.astype(bf16), bo=bo,
        dims=dict(E=E, H=H, V=V, Ep=Ep, Hp=Hp, Vp=Vp, tile_v=tile_v),
    )


# ---------------------------------------------------------------------------
# Per-sequence precompute (hoisted out of the per-token step)
# ---------------------------------------------------------------------------
def precompute_encoder(packed, encoder_outputs):
    d = packed['dims']
    H, Hp = d['H'], d['Hp']
    T, B = encoder_outputs.shape[0], encoder_outputs.shape[1]
    Bp = _round_up(B, 8)
    # T only ever sits on a sublane axis -> pad to 8, not 128.
    Tp = _round_up(T, 8)

    enc = jnp.transpose(encoder_outputs, (1, 0, 2))               # (B, T, H)
    enc = jnp.pad(enc, ((0, Bp - B), (0, Tp - T), (0, Hp - H))).astype(jnp.bfloat16)
    tmask = jnp.where(jnp.arange(Tp)[None, :, None] < T, 0.0, NEG_INF)
    tmask = tmask.astype(jnp.float32)                             # (1, Tp, 1)

    keys = pl.pallas_call(
        _keys_kernel,
        out_shape=jax.ShapeDtypeStruct((Bp, Tp, Hp), jnp.bfloat16),
        grid=(Bp,),
        in_specs=[
            pl.BlockSpec((1, Tp, Hp), lambda b: (b, 0, 0)),
            pl.BlockSpec((Hp, Hp), lambda b: (0, 0)),
            pl.BlockSpec((1, Hp), lambda b: (0, 0)),
        ],
        out_specs=pl.BlockSpec((1, Tp, Hp), lambda b: (b, 0, 0)),
        compiler_params=pltpu.CompilerParams(
            dimension_semantics=("parallel",)),
    )(enc, packed['wa_e'], packed['ba'])

    return dict(enc=enc, keys=keys, tmask=tmask, B=B, T=T)


# ---------------------------------------------------------------------------
# One fused decode step (padded layouts in / padded layouts out)
# ---------------------------------------------------------------------------
def _full_spec(arr):
    nd = arr.ndim
    return pl.BlockSpec(arr.shape, lambda j, _nd=nd: (0,) * _nd)


def _nbytes(a):
    return int(a.size) * jnp.dtype(a.dtype).itemsize


def decode_step(packed, enc_state, input_tokens_padded, hc_padded):
    d = packed['dims']
    Hp, Vp, tile_v = d['Hp'], d['Vp'], d['tile_v']
    enc, keys, tmask = enc_state['enc'], enc_state['keys'], enc_state['tmask']
    h_p, c_p = hc_padded
    L, Bp, _ = h_p.shape
    Tp = enc.shape[1]
    n_vt = Vp // tile_v
    bf16 = jnp.bfloat16

    emb = packed['embed'][input_tokens_padded]                    # (Bp, Ep) f32

    inputs = (emb, enc, keys, tmask, h_p, c_p,
              packed['wa_h'], packed['v'], packed['w0'], packed['b0'],
              packed['w1'], packed['b1'])
    in_specs = [_full_spec(a) for a in inputs] + [
        pl.BlockSpec((2 * Hp, tile_v), lambda j: (0, j)),         # wo tile
        pl.BlockSpec((1, tile_v), lambda j: (0, j)),              # bo tile
    ]

    out_shape = (
        jax.ShapeDtypeStruct((L, Bp, Hp), jnp.float32),           # h_new
        jax.ShapeDtypeStruct((L, Bp, Hp), jnp.float32),           # c_new
        jax.ShapeDtypeStruct((Bp, Tp, 1), jnp.float32),           # attention
        jax.ShapeDtypeStruct((Bp, Vp), jnp.float32),              # logits
        jax.ShapeDtypeStruct((Bp, 1), jnp.float32),               # logsumexp
    )
    out_specs = (
        pl.BlockSpec((L, Bp, Hp), lambda j: (0, 0, 0)),
        pl.BlockSpec((L, Bp, Hp), lambda j: (0, 0, 0)),
        pl.BlockSpec((Bp, Tp, 1), lambda j: (0, 0, 0)),
        pl.BlockSpec((Bp, tile_v), lambda j: (0, j)),             # lane-dense tiles
        pl.BlockSpec((Bp, 1), lambda j: (0, 0)),
    )
    scratch_shapes = [
        pltpu.VMEM((Bp, 2 * Hp), bf16),                           # [h1n | context]
        pltpu.VMEM((Bp, 1), jnp.float32),                         # running max
        pltpu.VMEM((Bp, 1), jnp.float32),                         # running sum-exp
    ]

    # size the scoped VMEM to the actual footprint (defaults: 16 MiB v5e /
    # 32 MiB v6e+v7x); clamp at 64 MiB so it also fits v7x's physical VMEM.
    wo_tile_bytes = 2 * Hp * tile_v * 2 + tile_v * 4
    est = (sum(_nbytes(a) for a in inputs)
           + 2 * wo_tile_bytes                                    # double-buffered tiles
           + 2 * L * Bp * Hp * 4 + Bp * Tp * 4                    # h/c/attn outputs
           + 2 * Bp * tile_v * 4 + Bp * 4                         # logits tiles + lse
           + Bp * 2 * Hp * 2 + 2 * Bp * 4)                        # scratch
    vmem_limit = int(min(max(2 * est + (4 << 20), 32 << 20), 64 << 20))

    h_new, c_new, attn, logits, lse = pl.pallas_call(
        functools.partial(_decode_step_kernel, bf16_energy=_use_bf16_energy()),
        out_shape=out_shape,
        grid=(n_vt,),
        in_specs=in_specs,
        out_specs=out_specs,
        scratch_shapes=scratch_shapes,
        compiler_params=pltpu.CompilerParams(
            dimension_semantics=("arbitrary",),   # online lse carried in scratch
            vmem_limit_bytes=vmem_limit),
    )(*inputs, packed['wo'], packed['bo'])

    logp = logits - lse                                           # (Bp, Vp) f32
    return logp, (h_new, c_new), attn


# ---------------------------------------------------------------------------
# Module-compatible wrapper: Decoder.forward (n_layers == 2, eval mode)
# ---------------------------------------------------------------------------
def decoder_forward(packed, input_tokens, last_hidden, encoder_outputs):
    d = packed['dims']
    H, V, Hp = d['H'], d['V'], d['Hp']
    h_prev, c_prev = last_hidden                                  # (L, B, H)
    L, B, _ = h_prev.shape
    T = encoder_outputs.shape[0]
    Bp = _round_up(B, 8)

    # per-sequence precompute (reuse across all decode steps of a sequence)
    enc_state = precompute_encoder(packed, encoder_outputs)

    # pad once; multi-step decode should keep h/c in padded layout across
    # steps and only strip at the end of the sequence.
    tok = jnp.pad(input_tokens, (0, Bp - B))
    h_p = jnp.pad(h_prev, ((0, 0), (0, Bp - B), (0, Hp - H)))
    c_p = jnp.pad(c_prev, ((0, 0), (0, Bp - B), (0, Hp - H)))

    logp_p, (h_new_p, c_new_p), attn_p = decode_step(
        packed, enc_state, tok, (h_p, c_p))

    logp = logp_p[:B, :V]
    h_new = h_new_p[:, :B, :H]
    c_new = c_new_p[:, :B, :H]
    attn_weights = attn_p[:B, :T, 0][:, None, :]                  # (B, 1, T)
    return logp, (h_new, c_new), attn_weights


# ---------------------------------------------------------------------------
# Pure-JAX reference mirroring the kernel math (bf16 weights/keys, f32 acc)
# ---------------------------------------------------------------------------
def _reference(params, input_tokens, last_hidden, encoder_outputs, bf16_energy):
    bf16 = jnp.bfloat16
    f32 = jnp.float32
    h_prev, c_prev = last_hidden
    L, B, H = h_prev.shape
    T = encoder_outputs.shape[0]
    emb = params['embed'][input_tokens]                           # (B, E) f32
    enc = jnp.transpose(encoder_outputs, (1, 0, 2)).astype(bf16)  # (B, T, H)
    h1 = h_prev[-1]

    keys = (jnp.dot(enc.reshape(B * T, H), params['wa_e'].astype(bf16),
                    preferred_element_type=f32).reshape(B, T, H)
            + params['ba']).astype(bf16)
    hid = jnp.dot(h1.astype(bf16), params['wa_h'].astype(bf16),
                  preferred_element_type=f32)
    if bf16_energy:
        energy = jnp.tanh(hid.astype(bf16)[:, None, :] + keys)
    else:
        energy = jnp.tanh(hid[:, None, :] + keys.astype(f32))
    score = jnp.sum(energy * params['v'][None, :, :], axis=2)     # (B, T) f32
    attn = jax.nn.softmax(score, axis=1)
    context = jnp.sum(attn[:, :, None] * enc, axis=1)             # (B, H) f32

    def lstm_fused(x, c, w, b):
        g = jnp.dot(x.astype(bf16), w.astype(bf16),
                    preferred_element_type=f32) + b
        i, f, n, o = jnp.split(g, 4, axis=1)
        cn = jax.nn.sigmoid(f) * c + jax.nn.sigmoid(i) * jnp.tanh(n)
        hn = jax.nn.sigmoid(o) * jnp.tanh(cn)
        return hn, cn

    w0 = jnp.concatenate([params['wih0_e'], params['wih0_c'], params['whh0']], 0)
    h0n, c0n = lstm_fused(jnp.concatenate([emb, context, h_prev[0]], 1),
                          c_prev[0], w0, params['b0'])
    w1 = jnp.concatenate([params['wih1'], params['whh1']], 0)
    h1n, c1n = lstm_fused(jnp.concatenate([h0n, h_prev[1]], 1),
                          c_prev[1], w1, params['b1'])

    wo = jnp.concatenate([params['wo_h'], params['wo_c']], 0)
    pin = jnp.concatenate([h1n, context], 1).astype(bf16)
    logits = jnp.dot(pin, wo.astype(bf16),
                     preferred_element_type=f32) + params['bo']
    logp = jax.nn.log_softmax(logits, axis=1)
    return logp, (jnp.stack([h0n, h1n]), jnp.stack([c0n, c1n])), attn[:, None, :]


if __name__ == "__main__":
    E, H, V = 32, 32, 300     # embed_size, hidden_size, output_size (vocab)
    L, B, T = 2, 4, 6         # n_layers, batch, encoder timesteps

    key = jax.random.PRNGKey(0)
    kp, k1, k2, k3, k4 = jax.random.split(key, 5)
    params = init_params(kp, E, H, V)
    # small tile_v so the test exercises the V-tiled grid + online logsumexp
    packed = pack_params(params, tile_v=128)

    tokens = jax.random.randint(k1, (B,), 0, V)                   # decoder input
    h0 = jax.random.normal(k2, (L, B, H), jnp.float32)            # last_hidden[0]
    c0 = jax.random.normal(k3, (L, B, H), jnp.float32)            # last_hidden[1]
    enc = jax.random.normal(k4, (T, B, H), jnp.float32)           # encoder_outputs

    logp, (hn, cn), attn_w = decoder_forward(packed, tokens, (h0, c0), enc)
    jax.block_until_ready((logp, hn, cn, attn_w))

    r_logp, (r_hn, r_cn), r_attn = _reference(params, tokens, (h0, c0), enc,
                                              _use_bf16_energy())
    assert jnp.allclose(logp, r_logp, atol=2e-3), "logp mismatch"
    assert jnp.allclose(hn, r_hn, atol=2e-3), "hidden mismatch"
    assert jnp.allclose(cn, r_cn, atol=2e-3), "cell mismatch"
    assert jnp.allclose(attn_w, r_attn, atol=2e-3), "attn mismatch"

    print("KERNEL_OK")
</pallas_src>

<mosaic_0001>
module attributes {stable_mosaic.version = 11 : i64} {
  func.func @_keys_kernel(%arg0: i32, %arg1: memref<1x8x128xbf16, #tpu.memory_space<vmem>>, %arg2: memref<128x128xbf16, #tpu.memory_space<vmem>>, %arg3: memref<1x128xf32, #tpu.memory_space<vmem>>, %arg4: memref<1x8x128xbf16, #tpu.memory_space<vmem>>) attributes {dimension_semantics = [#tpu.dimension_semantics<parallel>], iteration_bounds = array<i64: 8>, scalar_prefetch = 0 : i64, scratch_operands = 0 : i64, tpu.core_type = #tpu.core_type<tc>, window_params = [{transform_indices = @transform_0, window_bounds = array<i64: 1, 8, 128>}, {pipeline_mode = #tpu.pipeline_mode<synchronous>, transform_indices = @transform_1, window_bounds = array<i64: 128, 128>}, {pipeline_mode = #tpu.pipeline_mode<synchronous>, transform_indices = @transform_2, window_bounds = array<i64: 1, 128>}, {transform_indices = @transform_3, window_bounds = array<i64: 1, 8, 128>}]} {
    %c0 = arith.constant 0 : index
    %c0_0 = arith.constant 0 : index
    %c0_1 = arith.constant 0 : index
    %0 = vector.load %arg1[%c0, %c0_0, %c0_1] : memref<1x8x128xbf16, #tpu.memory_space<vmem>>, vector<1x8x128xbf16>
    %1 = vector.shape_cast %0 : vector<1x8x128xbf16> to vector<8x128xbf16>
    %c0_2 = arith.constant 0 : index
    %c0_3 = arith.constant 0 : index
    %2 = vector.load %arg2[%c0_2, %c0_3] : memref<128x128xbf16, #tpu.memory_space<vmem>>, vector<128x128xbf16>
    %cst = arith.constant dense<0.000000e+00> : vector<8x128xf32>
    %3 = tpu.matmul %1, %2, %cst {dimension_numbers = #tpu.dot_dimension_numbers<[1], [0], [0], [1], [0, 0, 1, 1], [], []>} : vector<8x128xbf16>, vector<128x128xbf16>, vector<8x128xf32> -> vector<8x128xf32>
    %c0_4 = arith.constant 0 : index
    %c0_5 = arith.constant 0 : index
    %4 = vector.load %arg3[%c0_4, %c0_5] : memref<1x128xf32, #tpu.memory_space<vmem>>, vector<1x128xf32>
    %5 = vector.broadcast %4 : vector<1x128xf32> to vector<8x128xf32>
    %6 = arith.addf %3, %5 : vector<8x128xf32>
    %7 = arith.truncf %6 : vector<8x128xf32> to vector<8x128xbf16>
    %c0_6 = arith.constant 0 : index
    %c0_7 = arith.constant 0 : index
    %c0_8 = arith.constant 0 : index
    %8 = vector.load %arg4[%c0_6, %c0_7, %c0_8] : memref<1x8x128xbf16, #tpu.memory_space<vmem>>, vector<1x8x128xbf16>
    %9 = vector.shape_cast %8 : vector<1x8x128xbf16> to vector<8x128xbf16>
    %10 = vector.shape_cast %7 : vector<8x128xbf16> to vector<1x8x128xbf16>
    tpu.vector_store %arg4[%c0_6, %c0_7, %c0_8], %10 {strides = array<i32>} : memref<1x8x128xbf16, #tpu.memory_space<vmem>>, vector<1x8x128xbf16>,
    return
  }
  func.func @transform_0(%arg0: i32) -> (i32, i32, i32) {
    %c0_i32 = arith.constant 0 : i32
    %c0_i32_0 = arith.constant 0 : i32
    %c0_i32_1 = arith.constant 0 : i32
    return %arg0, %c0_i32, %c0_i32_0 : i32, i32, i32
  }
  func.func @transform_1(%arg0: i32) -> (i32, i32) {
    %c0_i32 = arith.constant 0 : i32
    %c0_i32_0 = arith.constant 0 : i32
    %c0_i32_1 = arith.constant 0 : i32
    return %c0_i32, %c0_i32_0 : i32, i32
  }
  func.func @transform_2(%arg0: i32) -> (i32, i32) {
    %c0_i32 = arith.constant 0 : i32
    %c0_i32_0 = arith.constant 0 : i32
    %c0_i32_1 = arith.constant 0 : i32
    return %c0_i32, %c0_i32_0 : i32, i32
  }
  func.func @transform_3(%arg0: i32) -> (i32, i32, i32) {
    %c0_i32 = arith.constant 0 : i32
    %c0_i32_0 = arith.constant 0 : i32
    %c0_i32_1 = arith.constant 0 : i32
    return %arg0, %c0_i32, %c0_i32_0 : i32, i32, i32
  }
}

</mosaic_0001>

<llo_original>
// kernel: tpu_custom_call.1
$region0: #{tpu_custom_call.1}
  #allocation0 [shape = 'u32[]', space=smem, size = 0x4, offset = 0x4, fixed_abs, tag = 'smem constant byte address 0x4 - core index']
  #allocation1 [shape = 'u32[144,128]{1,0:T(1,128)}', space=vmem, size = 0x12000, scoped, tag = 'internal scratch']
  %s0 = inlined_call_operand.hbm [shape: bf16[8,8,128], index: 0, kind: input, shape index: {}]
  %s1 = inlined_call_operand.hbm [shape: bf16[128,128], index: 1, kind: input, shape index: {}]
  %s2 = inlined_call_operand.vmem [shape: f32[1,128], index: 2, kind: input, shape index: {}]
  %s3 = inlined_call_operand.hbm [shape: bf16[8,8,128], index: 3, kind: output, shape index: {}]
  %s4 = sld [smem:[#allocation0]]
  $region53: #{tpu_custom_call.1} parent=0
    _
  %s6 = ssub.s32 1, %s4
  %s7 = scalar_select 0, %s6, %s4
  $region1: #{tpu_custom_call.1} parent=0
    #allocation2 [shape = 'u8[4096]{0}', space=vmem, size = 0x1000, scoped, tag = 'input window, operand 0']
    #allocation3 [shape = 's32[2]{0}', space=sflag, size = 0x8, scoped, tag = 'scoped memory for tpu_custom_call.1']
    #allocation4 [shape = 's32[2]{0}', space=sflag, size = 0x8, scoped, tag = 'scoped memory for tpu_custom_call.1']
    #allocation5 [shape = 'u8[32768]{0}', space=vmem, size = 0x8000, scoped, tag = 'input window, operand 1, single buffered']
    #allocation6 [shape = 's32[1]{0}', space=sflag, size = 0x4, scoped, tag = 'scoped memory for tpu_custom_call.1']
    #allocation7 [shape = 'u8[4096]{0}', space=vmem, size = 0x1000, scoped, tag = 'output window, operand 0']
    %8 = vsyncpa [#allocation3], 0
    %s9 = scalar_lea.sflag [#allocation3], 1
    %10 = vsyncpa %s9, 0
    %11 = vsyncpa [#allocation6], 0
    %12 = vsyncpa [#allocation4], 0
    %s13 = scalar_lea.sflag [#allocation4], 1
    %14 = vsyncpa %s13, 0
    loop: start=0, step=1, limit=10
    $region2: #{tpu_custom_call.1} parent=1 // loop_pre_header
      _
    $region3: #{tpu_custom_call.1} parent=1 // loop_header
      %s16 = sphi 0, %s20
      %p17 = scmp.ge.s32.totalorder %s16, 10
      %s26 = sphi 0, %s28
      %s29 = sphi 0, %s26
      %s30 = sphi 0, %s29
      %s46 = sphi 0, %s30
      %s50 = sphi 0, %s50
      %s52 = sphi 0, %s50
      %s53 = sphi 0, %s52
      %s67 = sphi 0, %s53
      %s71 = sphi 0, %s71
      %s73 = sphi 0, %s71
      %s74 = sphi 0, %s73
      %s88 = sphi 0, %s74
      %s94 = sphi 0, %s96
      %s97 = sphi 0, %s94
      %s98 = sphi 0, %s97
      %s114 = sphi 0, %s98
    $region4: #{tpu_custom_call.1} parent=1 // loop_header_branch
      %19 = sbr.rel (%p17) target = $region8
    $region5: #{tpu_custom_call.1} parent=1 // loop_body
      %s21 = ssub.s32 %s16, 1
      %s22 = ssub.s32 %s16, 2
      %s23 = sadd.s32 %s16, 1
      %s24 = ssub.s32 %s16, %s23
      %p25 = scmp.eq.s32.totalorder %s24, 0
      %s27 = sadd.s32 %s26, 1
      %s28 = scalar_select %p25, %s26, %s27
      %p31 = pneg %p25
      %p32 = scmp.eq.s32.totalorder %s16, 7
      %p33 = por %p31, %p32
      %p34 = scmp.ne.s32.totalorder %s26, %s29
      %p35 = scmp.eq.s32.totalorder %s16, 0
      %p36 = por %p34, %p35
      %p37 = scmp.ne.s32.totalorder %s26, %s29
      %p38 = scmp.eq.s32.totalorder %s21, 7
      %p39 = por %p37, %p38
      %p40 = scmp.ne.s32.totalorder %s29, %s30
      %p41 = scmp.eq.s32.totalorder %s21, 0
      %p42 = por %p40, %p41
      %p43 = scmp.ne.s32.totalorder %s29, %s30
      %p44 = scmp.eq.s32.totalorder %s22, 7
      %p45 = por %p43, %p44
      %p47 = scmp.ne.s32.totalorder %s30, %s46
      %p48 = scmp.eq.s32.totalorder %s22, 0
      %p49 = por %p47, %p48
      %s51 = sadd.s32 %s50, 1
      %p54 = scmp.eq.s32.totalorder %s16, 7
      %p55 = scmp.ne.s32.totalorder %s50, %s52
      %p56 = scmp.eq.s32.totalorder %s16, 0
      %p57 = por %p55, %p56
      %p58 = scmp.ne.s32.totalorder %s50, %s52
      %p59 = scmp.eq.s32.totalorder %s21, 7
      %p60 = por %p58, %p59
      %p61 = scmp.ne.s32.totalorder %s52, %s53
      %p62 = scmp.eq.s32.totalorder %s21, 0
      %p63 = por %p61, %p62
      %p64 = scmp.ne.s32.totalorder %s52, %s53
      %p65 = scmp.eq.s32.totalorder %s22, 7
      %p66 = por %p64, %p65
      %p68 = scmp.ne.s32.totalorder %s53, %s67
      %p69 = scmp.eq.s32.totalorder %s22, 0
      %p70 = por %p68, %p69
      %s72 = sadd.s32 %s71, 1
      %p75 = scmp.eq.s32.totalorder %s16, 7
      %p76 = scmp.ne.s32.totalorder %s71, %s73
      %p77 = scmp.eq.s32.totalorder %s16, 0
      %p78 = por %p76, %p77
      %p79 = scmp.ne.s32.totalorder %s71, %s73
      %p80 = scmp.eq.s32.totalorder %s21, 7
      %p81 = por %p79, %p80
      %p82 = scmp.ne.s32.totalorder %s73, %s74
      %p83 = scmp.eq.s32.totalorder %s21, 0
      %p84 = por %p82, %p83
      %p85 = scmp.ne.s32.totalorder %s73, %s74
      %p86 = scmp.eq.s32.totalorder %s22, 7
      %p87 = por %p85, %p86
      %p89 = scmp.ne.s32.totalorder %s74, %s88
      %p90 = scmp.eq.s32.totalorder %s22, 0
      %p91 = por %p89, %p90
      %s92 = ssub.s32 %s16, %s23
      %p93 = scmp.eq.s32.totalorder %s92, 0
      %s95 = sadd.s32 %s94, 1
      %s96 = scalar_select %p93, %s94, %s95
      %p99 = pneg %p93
      %p100 = scmp.eq.s32.totalorder %s16, 7
      %p101 = por %p99, %p100
      %p102 = scmp.ne.s32.totalorder %s94, %s97
      %p103 = scmp.eq.s32.totalorder %s16, 0
      %p104 = por %p102, %p103
      %p105 = scmp.ne.s32.totalorder %s94, %s97
      %p106 = scmp.eq.s32.totalorder %s21, 7
      %p107 = por %p105, %p106
      %p108 = scmp.ne.s32.totalorder %s97, %s98
      %p109 = scmp.eq.s32.totalorder %s21, 0
      %p110 = por %p108, %p109
      %p111 = scmp.ne.s32.totalorder %s97, %s98
      %p112 = scmp.eq.s32.totalorder %s22, 7
      %p113 = por %p111, %p112
      %p115 = scmp.ne.s32.totalorder %s98, %s114
      %p116 = scmp.eq.s32.totalorder %s22, 0
      %p117 = por %p115, %p116
      %p118 = scmp.le.s32.totalorder 1, %s16
      %p119 = scmp.lt.s32.totalorder %s16, 9
      %p120 = pnand %p118, %p119
      %p121 = pneg %p120
      // Predicated region
      $region9: #{tpu_custom_call.1} parent=5 // pred_check
        _
      $region10: #{tpu_custom_call.1} parent=5 // pred_check_branch
        %123 = sbr.rel (%p120) target = $region12
      $region11: #{tpu_custom_call.1} parent=5 // pred_region
        %s124 = ssub.s32 %s16, 1
        // Predicated region
        $region13: #{tpu_custom_call.1} parent=11 // pred_check
          %p125 = pneg %p63
        $region14: #{tpu_custom_call.1} parent=11 // pred_check_branch
          %127 = sbr.rel (%p125) target = $region16
        $region15: #{tpu_custom_call.1} parent=11 // pred_region
          %s129 = ssub.s32 1024, 1024
          %130 = vsyncadd [#allocation6], %s129
          %s131 = sshll.u32 [#allocation5], 4
          %s132 = int_to_ptr.vmem [resolvable:$true] %s131
          %137 = dma.hbm_to_vmem [thread:$0]  %s1, 1024, %s132, [#allocation6], 64, 64, 4
        $region16: #{tpu_custom_call.1} parent=11 // pred_fallthru
          _
        // Predicated region
        $region17: #{tpu_custom_call.1} parent=11 // pred_check
          %p138 = pneg %p84
        $region18: #{tpu_custom_call.1} parent=11 // pred_check_branch
          %140 = sbr.rel (%p138) target = $region20
        $region19: #{tpu_custom_call.1} parent=11 // pred_region
          _
        $region20: #{tpu_custom_call.1} parent=11 // pred_fallthru
          _
      $region12: #{tpu_custom_call.1} parent=5 // pred_fallthru
        _
      %p141 = scmp.lt.s32.totalorder %s16, 8
      // Predicated region
      $region21: #{tpu_custom_call.1} parent=5 // pred_check
        %p142 = pneg %p141
      $region22: #{tpu_custom_call.1} parent=5 // pred_check_branch
        %144 = sbr.rel (%p142) target = $region24
      $region23: #{tpu_custom_call.1} parent=5 // pred_region
        // Predicated region
        $region25: #{tpu_custom_call.1} parent=23 // pred_check
          %p145 = pneg %p36
        $region26: #{tpu_custom_call.1} parent=23 // pred_check_branch
          %147 = sbr.rel (%p145) target = $region28
        $region27: #{tpu_custom_call.1} parent=23 // pred_region
          %s148 = sand.u32 %s26, 1
          %s149 = scalar_lea.sflag [#allocation3], %s148
          %s150 = sand.u32 %s26, 1
          %s151 = smul.addr %s150, 4
          %s152 = scalar_lea.vmem [#allocation2], %s151
          %s154 = ssub.s32 64, 64
          %155 = vsyncadd %s149, %s154
          %s156 = smul.addr %s16, 64
          %s157 = scalar_lea.hbm %s0, %s156
          %s159 = sshll.u32 %s152, 4
          %s160 = int_to_ptr.vmem [resolvable:$true] %s159
          %162 = dma.hbm_to_vmem [thread:$0]  %s157, 64, %s160, %s149
        $region28: #{tpu_custom_call.1} parent=23 // pred_fallthru
          _
      $region24: #{tpu_custom_call.1} parent=5 // pred_fallthru
        _
      %p163 = scmp.le.s32.totalorder 1, %s16
      %p164 = scmp.lt.s32.totalorder %s16, 9
      %p165 = pnand %p163, %p164
      %p166 = pneg %p165
      // Predicated region
      $region29: #{tpu_custom_call.1} parent=5 // pred_check
        _
      $region30: #{tpu_custom_call.1} parent=5 // pred_check_branch
        %168 = sbr.rel (%p165) target = $region32
      $region31: #{tpu_custom_call.1} parent=5 // pred_region
        %s169 = ssub.s32 %s16, 1
        %s170 = sand.u32 %s29, 1
        %s171 = scalar_lea.sflag [#allocation3], %s170
        %s172 = sand.u32 %s29, 1
        %s173 = smul.addr %s172, 4
        %s174 = scalar_lea.vmem [#allocation2], %s173
        // Predicated region
        $region33: #{tpu_custom_call.1} parent=31 // pred_check
          %p175 = pneg %p42
        $region34: #{tpu_custom_call.1} parent=31 // pred_check_branch
          %177 = sbr.rel (%p175) target = $region36
        $region35: #{tpu_custom_call.1} parent=31 // pred_region
          %178 = dma.done %s171, 64
        $region36: #{tpu_custom_call.1} parent=31 // pred_fallthru
          _
        // Predicated region
        $region37: #{tpu_custom_call.1} parent=31 // pred_check
          %p179 = pneg %p63
        $region38: #{tpu_custom_call.1} parent=31 // pred_check_branch
          %181 = sbr.rel (%p179) target = $region40
        $region39: #{tpu_custom_call.1} parent=31 // pred_region
          %182 = dma.done [#allocation6], 1024
        $region40: #{tpu_custom_call.1} parent=31 // pred_fallthru
          _
        %s183 = sand.u32 %s29, 1
        %s184 = scalar_lea.sflag [#allocation3], %s183
        %s185 = sand.u32 %s29, 1
        %s186 = smul.addr %s185, 4
        %s187 = scalar_lea.vmem [#allocation2], %s186
        %p188 = pneg %p42
        %p189 = pneg %p39
        %p190 = pneg %p63
        %p191 = pneg %p60
        %p192 = pneg %p84
        %p193 = pneg %p81
        %p194 = pneg %p110
        %p195 = pneg %p107
        %s196 = sand.u32 %s97, 1
        %s197 = scalar_lea.sflag [#allocation4], %s196
        %s198 = sand.u32 %s97, 1
        %s199 = smul.addr %s198, 4
        %s200 = scalar_lea.vmem [#allocation7], %s199
        %v202 = vld [vmem:[%s174] sm:$0xf]
        %v203 = vld [vmem:[#allocation5] sm:$0xf]
        %v204 = vld [vmem:[#allocation5 + $0x4] sm:$0xf]
        %v205 = vld [vmem:[#allocation5 + $0x8] sm:$0xf]
        %v206 = vld [vmem:[#allocation5 + $0xc] sm:$0xf]
        %v207 = vld [vmem:[#allocation5 + $0x10] sm:$0xf]
        %v208 = vld [vmem:[#allocation5 + $0x14] sm:$0xf]
        %v209 = vld [vmem:[#allocation5 + $0x18] sm:$0xf]
        %v210 = vld [vmem:[#allocation5 + $0x1c] sm:$0xf]
        %v211 = vld [vmem:[#allocation5 + $0x20] sm:$0xf]
        %v212 = vld [vmem:[#allocation5 + $0x24] sm:$0xf]
        %v213 = vld [vmem:[#allocation5 + $0x28] sm:$0xf]
        %v214 = vld [vmem:[#allocation5 + $0x2c] sm:$0xf]
        %v215 = vld [vmem:[#allocation5 + $0x30] sm:$0xf]
        %v216 = vld [vmem:[#allocation5 + $0x34] sm:$0xf]
        %v217 = vld [vmem:[#allocation5 + $0x38] sm:$0xf]
        %v218 = vld [vmem:[#allocation5 + $0x3c] sm:$0xf]
        %v219 = vld [vmem:[%s2] sm:$0x1]
        %v221 = vlaneseq
        %v222 = vshrl.u32 %v221, 7
        %v223 = vsub.s32 0, %v222
        %v224 = vrot.slane %v219, %v223
        %v242 = vunpack.c.l.b16 %v203
        %v243 = vunpack.c.l.b16 %v204
        %v244 = vunpack.c.l.b16 %v205
        %v245 = vunpack.c.l.b16 %v206
        %v246 = vunpack.c.l.b16 %v207
        %v247 = vunpack.c.l.b16 %v208
        %v248 = vunpack.c.l.b16 %v209
        %v249 = vunpack.c.l.b16 %v210
        %v250 = vunpack.c.l.b16 %v211
        %v251 = vunpack.c.l.b16 %v212
        %v252 = vunpack.c.l.b16 %v213
        %v253 = vunpack.c.l.b16 %v214
        %v254 = vunpack.c.l.b16 %v215
        %v255 = vunpack.c.l.b16 %v216
        %v256 = vunpack.c.l.b16 %v217
        %v257 = vunpack.c.l.b16 %v218
        %v258 = vpack.c.b16 %v243, %v242
        %v259 = vpack.c.b16 %v245, %v244
        %v260 = vpack.c.b16 %v247, %v246
        %v261 = vpack.c.b16 %v249, %v248
        %v262 = vpack.c.b16 %v251, %v250
        %v263 = vpack.c.b16 %v253, %v252
        %v264 = vpack.c.b16 %v255, %v254
        %v265 = vpack.c.b16 %v257, %v256
        %274 = vmatprep.subr.bf16.mxu0 0
        %275 = vmatpush1.bf16.msra.mxu0 %v265
        %276 = vmatprep.subr.bf16.mxu0 0
        %277 = vmatpush1.bf16.msra.mxu0 %v264
        %278 = vmatprep.subr.bf16.mxu0 0
        %279 = vmatpush1.bf16.msra.mxu0 %v263
        %280 = vmatprep.subr.bf16.mxu0 0
        %281 = vmatpush1.bf16.msra.mxu0 %v262
        %282 = vmatprep.subr.bf16.mxu0 0
        %283 = vmatpush1.bf16.msra.mxu0 %v261
        %284 = vmatprep.subr.bf16.mxu0 0
        %285 = vmatpush1.bf16.msra.mxu0 %v260
        %286 = vmatprep.subr.bf16.mxu0 0
        %287 = vmatpush1.bf16.msra.mxu0 %v259
        %288 = vmatprep.subr.bf16.mxu0 0
        %289 = vmatpush1.bf16.msra.mxu0 %v258
        %290 = vmatprep.subr.bf16.mxu0 0
        %291 = vmatpush2.bf16.msra.mxu0 0
        %292 = vmatprep.subr.bf16.mxu0 0
        %293 = vmatpush2.bf16.msra.mxu0 0
        %294 = vmatprep.subr.bf16.mxu0 0
        %295 = vmatpush2.bf16.msra.mxu0 0
        %296 = vmatprep.subr.bf16.mxu0 0
        %297 = vmatpush2.bf16.msra.mxu0 0
        %298 = vmatprep.subr.bf16.mxu0 0
        %299 = vmatpush2.bf16.msra.mxu0 0
        %300 = vmatprep.subr.bf16.mxu0 0
        %301 = vmatpush2.bf16.msra.mxu0 0
        %302 = vmatprep.subr.bf16.mxu0 0
        %303 = vmatpush2.bf16.msra.mxu0 0
        %304 = vmatprep.subr.bf16.mxu0 0
        %305 = vmatpush2.bf16.msra.mxu0 0
        %306 = vmatprep.mubr.bf16.mxu0 0
        %307 = vmatmul.mubr.bf16.gmra.mxu0 %v202
        %v308 = vpop.f32.mrf.mxu0
        %v309 = vadd.f32 %v224, %v308
        %v310 = vpop.f32.mrf.mxu0
        %v311 = vpop.f32.mrf.mxu0
        %v312 = vpop.f32.mrf.mxu0
        %313 = vdwg.mxu0
        %v314 = vpack.c.bf16 %v309, %v309
        %315 = vst [vmem:[%s200] sm:$0xf] %v314
        %s316 = sand.u32 %s97, 1
        %s317 = scalar_lea.sflag [#allocation4], %s316
        %s318 = sand.u32 %s97, 1
        %s319 = smul.addr %s318, 4
        %s320 = scalar_lea.vmem [#allocation7], %s319
        // Predicated region
        $region41: #{tpu_custom_call.1} parent=31 // pred_check
          %p321 = pneg %p107
        $region42: #{tpu_custom_call.1} parent=31 // pred_check_branch
          %323 = sbr.rel (%p321) target = $region44
        $region43: #{tpu_custom_call.1} parent=31 // pred_region
          %s325 = ssub.s32 64, 64
          %326 = vsyncadd %s317, %s325
          %s327 = smul.addr %s21, 64
          %s328 = scalar_lea.hbm %s3, %s327
          %s330 = sshll.u32 %s320, 4
          %s331 = int_to_ptr.vmem [resolvable:$true] %s330
          %333 = dma.vmem_to_hbm [thread:$0]  %s331, 64, %s328, %s317
        $region44: #{tpu_custom_call.1} parent=31 // pred_fallthru
          _
      $region32: #{tpu_custom_call.1} parent=5 // pred_fallthru
        _
      %p334 = scmp.le.s32.totalorder 2, %s16
      // Predicated region
      $region45: #{tpu_custom_call.1} parent=5 // pred_check
        %p335 = pneg %p334
      $region46: #{tpu_custom_call.1} parent=5 // pred_check_branch
        %337 = sbr.rel (%p335) target = $region48
      $region47: #{tpu_custom_call.1} parent=5 // pred_region
        %s338 = ssub.s32 %s16, 2
        // Predicated region
        $region49: #{tpu_custom_call.1} parent=47 // pred_check
          %p339 = pneg %p113
        $region50: #{tpu_custom_call.1} parent=47 // pred_check_branch
          %341 = sbr.rel (%p339) target = $region52
        $region51: #{tpu_custom_call.1} parent=47 // pred_region
          %s342 = sand.u32 %s98, 1
          %s343 = scalar_lea.sflag [#allocation4], %s342
          %s344 = sand.u32 %s98, 1
          %s345 = smul.addr %s344, 4
          %s346 = scalar_lea.vmem [#allocation7], %s345
          %347 = dma.done %s343, 64
        $region52: #{tpu_custom_call.1} parent=47 // pred_fallthru
          _
      $region48: #{tpu_custom_call.1} parent=5 // pred_fallthru
        _
    $region6: #{tpu_custom_call.1} parent=1 // loop_footer
      %s20 = sadd.s32 1, %s16
    $region7: #{tpu_custom_call.1} parent=1 // loop_footer_branch
      %15 = sbr.rel target = $region3
    $region8: #{tpu_custom_call.1} parent=1 // loop_exit
      _
    %348 = vsyncpa [#allocation3], 1
    %s349 = scalar_lea.sflag [#allocation3], 1
    %350 = vsyncpa %s349, 1
    %351 = vsyncpa [#allocation6], 1
    %352 = vsyncpa [#allocation4], 1
    %s353 = scalar_lea.sflag [#allocation4], 1
    %354 = vsyncpa %s353, 1

</llo_original>
